<compile_context>
chip_gen: v7x
topology: tpu7x:2x2x1
jax: 0.10.0
libtpu: 0.0.40
codegen_flags: <defaults>
</compile_context>

<pallas_src>
import functools

import jax
import jax.numpy as jnp
from jax.experimental import pallas as pl
from jax.experimental.pallas import tpu as pltpu


def _round_up(x, m):
    return ((x + m - 1) // m) * m


def _vmem_capacity_bytes():
    """Per-core VMEM capacity; conservative fallback if the query is unavailable."""
    try:
        return int(pltpu.get_tpu_info().vmem_capacity_bytes)
    except Exception:
        return 64 << 20   # v7x per-TensorCore physical VMEM (smallest of the three)


def _choose_block_subjects(num_subjects, num_time_points, num_other_nodes,
                           *, target_bytes):
    """Subjects per block, budgeted on the *padded* VMEM footprint of the stream."""
    # One subject's (T, N) slab, padded to (8, 128) tiles, f32 worst case.
    per_subject = _round_up(num_time_points, 8) * _round_up(num_other_nodes, 128) * 4
    sb = max(1, int(target_bytes // per_subject))
    if num_subjects > 8:
        # Keep at least 2 grid chunks so v7x's two TensorCores both stream.
        sb = min(sb, _round_up(pl.cdiv(num_subjects, 2), 8))
    if sb >= num_subjects:
        return num_subjects            # single chunk; block == full subject dim
    # Second-to-minor dim of the 2D operands (node/J/h) must be a multiple of 8.
    sb = max(8, (sb // 8) * 8)
    return int(min(sb, num_subjects))


def _npll_kernel(node_ref, x_ref, h_ref, j_ref, out_ref, *,
                 beta, num_subjects, block_subjects, mask_tail):
    # node_ref: (sb, T)     +/-1 spins of the target node (time on lanes)
    # x_ref:    (sb, T, N)  +/-1 spins of the other nodes (streamed as stored)
    # h_ref:    (sb, 1)     f32
    # j_ref:    (sb, N)     f32
    # out_ref:  (1, 1, 1)   f32  partial sum of log(1 + prob_accept) for this chunk
    x = x_ref[...]                                   # streamed dtype, no explicit cast
    j = j_ref[...]                                   # (sb, N) f32

    # VPU contraction over the other-node axis: broadcast J along sublanes (time),
    # multiply, cross-lane reduce.  Accumulates in f32; hides under the block DMA.
    proj = jnp.sum(x * j[:, None, :], axis=-1)       # (sb, T) f32

    node = node_ref[...]                             # (sb, T)
    h = h_ref[...]                                   # (sb, 1)
    delta_h = 2.0 * node * (h + proj)                # (sb, T) f32

    # log(1 + clamp(exp(-beta*dH), 0, 1)) == log1p(exp(min(-beta*dH, 0)))
    val = jnp.log1p(jnp.exp(jnp.minimum(-beta * delta_h, 0.0)))   # (sb, T)

    per_subject = jnp.sum(val, axis=-1, keepdims=True)            # (sb, 1)
    if mask_tail:
        # Ragged last chunk: drop contributions of out-of-range subjects (their
        # block rows contain unspecified data read past the array boundary).
        c = pl.program_id(0)
        subj = c * block_subjects + jax.lax.broadcasted_iota(
            jnp.int32, (block_subjects, 1), 0)
        per_subject = jnp.where(subj < num_subjects, per_subject, 0.0)

    out_ref[...] = jnp.full((1, 1, 1), jnp.sum(per_subject), dtype=out_ref.dtype)


def ising_negative_log_pseudo_likelihood(node_ts, not_node_ts, h_node, J, *, beta):
    """node_ts: (S, T, 1), not_node_ts: (S, T, N), h_node: (S, 1, 1), J: (S, N, 1)."""
    S, T, _ = node_ts.shape
    N = not_node_ts.shape[-1]

    cap = _vmem_capacity_bytes()
    # ~8 MiB blocks on v5e/v6e (128 MiB VMEM), ~4 MiB on v7x (64 MiB per core).
    target_bytes = max(2 << 20, min(8 << 20, cap // 16))
    sb = _choose_block_subjects(S, T, N, target_bytes=target_bytes)
    num_chunks = pl.cdiv(S, sb)
    mask_tail = (S % sb) != 0

    # Free reshapes (trailing singleton dims) -- no copies, no casts of the big tensor.
    node2 = jnp.reshape(node_ts, (S, T))
    h2 = jnp.reshape(h_node, (S, 1)).astype(jnp.float32)
    j2 = jnp.reshape(J, (S, N)).astype(jnp.float32)
    x = not_node_ts                                   # streamed as stored in HBM

    # VMEM plan (padded (8,128) tile sizes): double-buffered inputs, plus the
    # broadcast-multiply temporary (same size as the x block), plus (sb,T) temps.
    itemsize = jnp.dtype(not_node_ts.dtype).itemsize
    x_block = sb * _round_up(T, 8) * _round_up(N, 128) * itemsize
    row_t = _round_up(sb, 8) * _round_up(T, 128) * 4
    row_n = _round_up(sb, 8) * _round_up(N, 128) * 4
    row_1 = _round_up(sb, 8) * 128 * 4
    vmem_need = 3 * x_block + 2 * (row_t + row_n + row_1) + 6 * row_t + (2 << 20)
    vmem_limit = int(min(max(vmem_need, 16 << 20), cap - (8 << 20)))

    partials = pl.pallas_call(
        functools.partial(_npll_kernel, beta=float(beta), num_subjects=S,
                          block_subjects=sb, mask_tail=mask_tail),
        out_shape=jax.ShapeDtypeStruct((num_chunks, 1, 1), jnp.float32),
        grid_spec=pltpu.PrefetchScalarGridSpec(
            num_scalar_prefetch=0,
            grid=(num_chunks,),
            in_specs=[
                pl.BlockSpec((sb, T), lambda c: (c, 0)),        # node spins
                pl.BlockSpec((sb, T, N), lambda c: (c, 0, 0)),  # other-node spins
                pl.BlockSpec((sb, 1), lambda c: (c, 0)),        # h
                pl.BlockSpec((sb, N), lambda c: (c, 0)),        # J row
            ],
            out_specs=pl.BlockSpec((1, 1, 1), lambda c: (c, 0, 0)),
        ),
        compiler_params=pltpu.CompilerParams(
            # Independent chunks -> both TensorCores stream on v7x; no effect on
            # single-TC v5e/v6e.
            dimension_semantics=("parallel",),
            vmem_limit_bytes=vmem_limit,
        ),
    )(node2, x, h2, j2)

    # Finish the mean outside the kernel (tiny reduction, better f32 accuracy than a
    # single running scalar across the whole grid).
    return jnp.sum(partials) / (S * T)


def _reference(node_ts, not_node_ts, h_node, J, *, beta):
    proj = jnp.matmul(not_node_ts, J, precision=jax.lax.Precision.HIGHEST)
    delta_h = 2.0 * node_ts * (h_node + proj)
    prob_accept = jnp.clip(jnp.exp(-beta * delta_h), 0.0, 1.0)
    return jnp.mean(jnp.log(1.0 + prob_accept))


if __name__ == "__main__":
    beta = 0.5
    num_subjects = 2
    num_time_points = 64
    num_other_nodes = 32

    key = jax.random.PRNGKey(0)
    k1, k2, k3, k4 = jax.random.split(key, 4)

    # Deterministic "parameters" (torch.randn equivalents in __init__).
    h_node = jax.random.normal(k1, (num_subjects, 1, 1), dtype=jnp.float32)
    J_not_node_vs_node = jax.random.normal(
        k2, (num_subjects, num_other_nodes, 1), dtype=jnp.float32)

    # Inputs: +/-1 spins as in an Ising time series.
    node_ts = jnp.sign(
        jax.random.normal(k3, (num_subjects, num_time_points, 1), dtype=jnp.float32))
    not_node_ts = jnp.sign(
        jax.random.normal(
            k4, (num_subjects, num_time_points, num_other_nodes), dtype=jnp.float32))

    result = ising_negative_log_pseudo_likelihood(
        node_ts, not_node_ts, h_node, J_not_node_vs_node, beta=beta)
    result = jax.block_until_ready(result)

    expected = _reference(node_ts, not_node_ts, h_node, J_not_node_vs_node, beta=beta)
    if not jnp.allclose(result, expected, rtol=1e-5, atol=1e-5):
        raise AssertionError(f"mismatch: kernel={result}, reference={expected}")

    print("KERNEL_OK")
</pallas_src>

<mosaic_0001>
module attributes {stable_mosaic.version = 11 : i64} {
  func.func @_npll_kernel(%arg0: i32, %arg1: memref<2x64xf32, #tpu.memory_space<vmem>>, %arg2: memref<2x64x32xf32, #tpu.memory_space<vmem>>, %arg3: memref<2x1xf32, #tpu.memory_space<vmem>>, %arg4: memref<2x32xf32, #tpu.memory_space<vmem>>, %arg5: memref<1x1x1xf32, #tpu.memory_space<vmem>>) attributes {dimension_semantics = [#tpu.dimension_semantics<parallel>], iteration_bounds = array<i64: 1>, scalar_prefetch = 0 : i64, scratch_operands = 0 : i64, tpu.core_type = #tpu.core_type<tc>, window_params = [{transform_indices = @transform_0, window_bounds = array<i64: 2, 64>}, {transform_indices = @transform_1, window_bounds = array<i64: 2, 64, 32>}, {transform_indices = @transform_2, window_bounds = array<i64: 2, 1>}, {transform_indices = @transform_3, window_bounds = array<i64: 2, 32>}, {transform_indices = @transform_4, window_bounds = array<i64: 1, 1, 1>}]} {
    %c0 = arith.constant 0 : index
    %c0_0 = arith.constant 0 : index
    %c0_1 = arith.constant 0 : index
    %0 = vector.load %arg2[%c0, %c0_0, %c0_1] : memref<2x64x32xf32, #tpu.memory_space<vmem>>, vector<2x64x32xf32>
    %c0_2 = arith.constant 0 : index
    %c0_3 = arith.constant 0 : index
    %1 = vector.load %arg4[%c0_2, %c0_3] : memref<2x32xf32, #tpu.memory_space<vmem>>, vector<2x32xf32>
    %2 = vector.shape_cast %1 : vector<2x32xf32> to vector<2x1x32xf32>
    %3 = vector.broadcast %2 : vector<2x1x32xf32> to vector<2x64x32xf32>
    %4 = arith.mulf %0, %3 : vector<2x64x32xf32>
    %cst = arith.constant dense<0.000000e+00> : vector<2x64xf32>
    %5 = vector.multi_reduction <add>, %4, %cst [2] : vector<2x64x32xf32> to vector<2x64xf32>
    %c0_4 = arith.constant 0 : index
    %c0_5 = arith.constant 0 : index
    %6 = vector.load %arg1[%c0_4, %c0_5] : memref<2x64xf32, #tpu.memory_space<vmem>>, vector<2x64xf32>
    %c0_6 = arith.constant 0 : index
    %c0_7 = arith.constant 0 : index
    %7 = vector.load %arg3[%c0_6, %c0_7] : memref<2x1xf32, #tpu.memory_space<vmem>>, vector<2x1xf32>
    %cst_8 = arith.constant 2.000000e+00 : f32
    %8 = vector.broadcast %cst_8 : f32 to vector<2x64xf32>
    %9 = arith.mulf %8, %6 : vector<2x64xf32>
    %10 = vector.broadcast %7 : vector<2x1xf32> to vector<2x64xf32>
    %11 = arith.addf %10, %5 : vector<2x64xf32>
    %12 = arith.mulf %9, %11 : vector<2x64xf32>
    %cst_9 = arith.constant -5.000000e-01 : f32
    %13 = vector.broadcast %cst_9 : f32 to vector<2x64xf32>
    %14 = arith.mulf %13, %12 : vector<2x64xf32>
    %cst_10 = arith.constant 0.000000e+00 : f32
    %15 = vector.broadcast %cst_10 : f32 to vector<2x64xf32>
    %16 = arith.minimumf %14, %15 : vector<2x64xf32>
    %17 = math.exp %16 : vector<2x64xf32>
    %18 = math.log1p %17 : vector<2x64xf32>
    %cst_11 = arith.constant dense<0.000000e+00> : vector<2xf32>
    %19 = vector.multi_reduction <add>, %18, %cst_11 [1] : vector<2x64xf32> to vector<2xf32>
    %20 = vector.shape_cast %19 : vector<2xf32> to vector<2x1xf32>
    %21 = vector.shape_cast %20 : vector<2x1xf32> to vector<1x2x1xf32>
    %cst_12 = arith.constant dense<0.000000e+00> : vector<1xf32>
    %22 = vector.multi_reduction <add>, %21, %cst_12 [1, 2] : vector<1x2x1xf32> to vector<1xf32>
    %23 = vector.shape_cast %22 : vector<1xf32> to vector<1x1x1xf32>
    %24 = vector.extract %23[0, 0, 0] : f32 from vector<1x1x1xf32>
    %25 = vector.broadcast %24 : f32 to vector<1x1x1xf32>
    %c0_13 = arith.constant 0 : index
    %c0_14 = arith.constant 0 : index
    %c0_15 = arith.constant 0 : index
    %26 = vector.load %arg5[%c0_13, %c0_14, %c0_15] : memref<1x1x1xf32, #tpu.memory_space<vmem>>, vector<1x1x1xf32>
    tpu.vector_store %arg5[%c0_13, %c0_14, %c0_15], %25 {strides = array<i32>} : memref<1x1x1xf32, #tpu.memory_space<vmem>>, vector<1x1x1xf32>,
    return
  }
  func.func @transform_0(%arg0: i32) -> (i32, i32) {
    %c0_i32 = arith.constant 0 : i32
    %c0_i32_0 = arith.constant 0 : i32
    return %arg0, %c0_i32 : i32, i32
  }
  func.func @transform_1(%arg0: i32) -> (i32, i32, i32) {
    %c0_i32 = arith.constant 0 : i32
    %c0_i32_0 = arith.constant 0 : i32
    %c0_i32_1 = arith.constant 0 : i32
    return %arg0, %c0_i32, %c0_i32_0 : i32, i32, i32
  }
  func.func @transform_2(%arg0: i32) -> (i32, i32) {
    %c0_i32 = arith.constant 0 : i32
    %c0_i32_0 = arith.constant 0 : i32
    return %arg0, %c0_i32 : i32, i32
  }
  func.func @transform_3(%arg0: i32) -> (i32, i32) {
    %c0_i32 = arith.constant 0 : i32
    %c0_i32_0 = arith.constant 0 : i32
    return %arg0, %c0_i32 : i32, i32
  }
  func.func @transform_4(%arg0: i32) -> (i32, i32, i32) {
    %c0_i32 = arith.constant 0 : i32
    %c0_i32_0 = arith.constant 0 : i32
    %c0_i32_1 = arith.constant 0 : i32
    return %arg0, %c0_i32, %c0_i32_0 : i32, i32, i32
  }
}

</mosaic_0001>

<llo_original>
// kernel: tpu_custom_call.1
$region0: #{tpu_custom_call.1}
  #allocation0 [shape = 'u32[]', space=smem, size = 0x4, offset = 0x4, fixed_abs, tag = 'smem constant byte address 0x4 - core index']
  #allocation1 [shape = 'u32[144,128]{1,0:T(1,128)}', space=vmem, size = 0x12000, scoped, tag = 'internal scratch']
  %s0 = inlined_call_operand.vmem [shape: f32[2,64], index: 0, kind: input, shape index: {}]
  %s1 = inlined_call_operand.vmem [shape: f32[2,64,32], index: 1, kind: input, shape index: {}]
  %s2 = inlined_call_operand.vmem [shape: f32[2,1], index: 2, kind: input, shape index: {}]
  %s3 = inlined_call_operand.vmem [shape: f32[2,32], index: 3, kind: input, shape index: {}]
  %s4 = inlined_call_operand.hbm [shape: f32[1,1,1], index: 4, kind: output, shape index: {}]
  %s5 = sld [smem:[#allocation0]]
  $region26: #{tpu_custom_call.1} parent=0
    _
  %s7 = ssub.s32 1, %s5
  %s8 = scalar_select 0, %s7, %s5
  $region1: #{tpu_custom_call.1} parent=0
    #allocation2 [shape = 'u8[512]{0}', space=vmem, size = 0x400, scoped, tag = 'output window, operand 0, single buffered']
    #allocation3 [shape = 's32[1]{0}', space=sflag, size = 0x4, scoped, tag = 'scoped memory for tpu_custom_call.1']
    %9 = vsyncpa [#allocation3], 0
    // Predicated region
    $region2: #{tpu_custom_call.1} parent=1 // pred_check
      _
    $region3: #{tpu_custom_call.1} parent=1 // pred_check_branch
      %11 = sbr.rel (0) target = $region5
    $region4: #{tpu_custom_call.1} parent=1 // pred_region
      _
    $region5: #{tpu_custom_call.1} parent=1 // pred_fallthru
      _
    // Predicated region
    $region6: #{tpu_custom_call.1} parent=1 // pred_check
      _
    $region7: #{tpu_custom_call.1} parent=1 // pred_check_branch
      %13 = sbr.rel (0) target = $region9
    $region8: #{tpu_custom_call.1} parent=1 // pred_region
      _
    $region9: #{tpu_custom_call.1} parent=1 // pred_fallthru
      _
    // Predicated region
    $region10: #{tpu_custom_call.1} parent=1 // pred_check
      _
    $region11: #{tpu_custom_call.1} parent=1 // pred_check_branch
      %15 = sbr.rel (0) target = $region13
    $region12: #{tpu_custom_call.1} parent=1 // pred_region
      _
    $region13: #{tpu_custom_call.1} parent=1 // pred_fallthru
      _
    // Predicated region
    $region14: #{tpu_custom_call.1} parent=1 // pred_check
      _
    $region15: #{tpu_custom_call.1} parent=1 // pred_check_branch
      %17 = sbr.rel (0) target = $region17
    $region16: #{tpu_custom_call.1} parent=1 // pred_region
      _
    $region17: #{tpu_custom_call.1} parent=1 // pred_fallthru
      _
    %v18 = vld [vmem:[%s1] sm:$0xff]
    %v19 = vld [vmem:[%s1 + $0x8] sm:$0xff]
    %v20 = vld [vmem:[%s1 + $0x10] sm:$0xff]
    %v21 = vld [vmem:[%s1 + $0x18] sm:$0xff]
    %v22 = vld [vmem:[%s1 + $0x20] sm:$0xff]
    %v23 = vld [vmem:[%s1 + $0x28] sm:$0xff]
    %v24 = vld [vmem:[%s1 + $0x30] sm:$0xff]
    %v25 = vld [vmem:[%s1 + $0x38] sm:$0xff]
    %v26 = vld [vmem:[%s1 + $0x40] sm:$0xff]
    %v27 = vld [vmem:[%s1 + $0x48] sm:$0xff]
    %v28 = vld [vmem:[%s1 + $0x50] sm:$0xff]
    %v29 = vld [vmem:[%s1 + $0x58] sm:$0xff]
    %v30 = vld [vmem:[%s1 + $0x60] sm:$0xff]
    %v31 = vld [vmem:[%s1 + $0x68] sm:$0xff]
    %v32 = vld [vmem:[%s1 + $0x70] sm:$0xff]
    %v33 = vld [vmem:[%s1 + $0x78] sm:$0xff]
    %v34 = vld [vmem:[%s3] sm:$0x3]
    %v37 = vunpack.c.l.s4 1966171168
    %v38 = vunpack.c.0.s8 %v37
    %v39 = vlaneseq
    %v40 = vshrl.u32 %v39, 7
    %v41 = vsub.s32 %v38, %v40
    %v42 = vrot.slane %v34, %v41
    %v43 = vcombine.high %v42, %v42
    %v45 = vunpack.c.l.s4 1966171168
    %v46 = vunpack.c.0.s8 %v45
    %v47 = vlaneseq
    %v48 = vshrl.u32 %v47, 7
    %v49 = vsub.s32 %v46, %v48
    %v50 = vrot.slane %v42, %v49
    %v52 = vunpack.c.l.s4 1966171168
    %v53 = vunpack.c.0.s8 %v52
    %v54 = vlaneseq
    %v55 = vshrl.u32 %v54, 7
    %v56 = vsub.s32 %v53, %v55
    %v57 = vrot.slane %v43, %v56
    %v58 = vlaneseq
    %v59 = vshrl.u32 %v58, 7
    %v60 = vsub.s32 0, %v59
    %v61 = vrot.slane %v50, %v60
    %v62 = vlaneseq
    %v63 = vshrl.u32 %v62, 7
    %v64 = vsub.s32 0, %v63
    %v65 = vrot.slane %v57, %v64
    %v68 = vmul.f32 %v18, %v61
    %v69 = vmul.f32 %v19, %v61
    %v70 = vmul.f32 %v20, %v61
    %v71 = vmul.f32 %v21, %v61
    %v72 = vmul.f32 %v22, %v61
    %v73 = vmul.f32 %v23, %v61
    %v74 = vmul.f32 %v24, %v61
    %v75 = vmul.f32 %v25, %v61
    %v76 = vmul.f32 %v26, %v65
    %v77 = vmul.f32 %v27, %v65
    %v78 = vmul.f32 %v28, %v65
    %v79 = vmul.f32 %v29, %v65
    %v80 = vmul.f32 %v30, %v65
    %v81 = vmul.f32 %v31, %v65
    %v82 = vmul.f32 %v32, %v65
    %v83 = vmul.f32 %v33, %v65
    %vm84 = vcmask 261120
    %v85 = vsel %vm84, %v68, 0.0
    %86 = vadd.xlane.f32.xlu0 %v85
    %v87 = vpop.xlane.xlu0 %86
    %v88 = vsel %vm84, %v69, 0.0
    %89 = vadd.xlane.f32.xlu0 %v88
    %v90 = vpop.xlane.xlu0 %89
    %v91 = vsel %vm84, %v70, 0.0
    %92 = vadd.xlane.f32.xlu0 %v91
    %v93 = vpop.xlane.xlu0 %92
    %v94 = vsel %vm84, %v71, 0.0
    %95 = vadd.xlane.f32.xlu0 %v94
    %v96 = vpop.xlane.xlu0 %95
    %v97 = vsel %vm84, %v72, 0.0
    %98 = vadd.xlane.f32.xlu0 %v97
    %v99 = vpop.xlane.xlu0 %98
    %v100 = vsel %vm84, %v73, 0.0
    %101 = vadd.xlane.f32.xlu0 %v100
    %v102 = vpop.xlane.xlu0 %101
    %v103 = vsel %vm84, %v74, 0.0
    %104 = vadd.xlane.f32.xlu0 %v103
    %v105 = vpop.xlane.xlu0 %104
    %v106 = vsel %vm84, %v75, 0.0
    %107 = vadd.xlane.f32.xlu0 %v106
    %v108 = vpop.xlane.xlu0 %107
    %v109 = vsel %vm84, %v76, 0.0
    %110 = vadd.xlane.f32.xlu0 %v109
    %v111 = vpop.xlane.xlu0 %110
    %v112 = vsel %vm84, %v77, 0.0
    %113 = vadd.xlane.f32.xlu0 %v112
    %v114 = vpop.xlane.xlu0 %113
    %v115 = vsel %vm84, %v78, 0.0
    %116 = vadd.xlane.f32.xlu0 %v115
    %v117 = vpop.xlane.xlu0 %116
    %v118 = vsel %vm84, %v79, 0.0
    %119 = vadd.xlane.f32.xlu0 %v118
    %v120 = vpop.xlane.xlu0 %119
    %v121 = vsel %vm84, %v80, 0.0
    %122 = vadd.xlane.f32.xlu0 %v121
    %v123 = vpop.xlane.xlu0 %122
    %v124 = vsel %vm84, %v81, 0.0
    %125 = vadd.xlane.f32.xlu0 %v124
    %v126 = vpop.xlane.xlu0 %125
    %v127 = vsel %vm84, %v82, 0.0
    %128 = vadd.xlane.f32.xlu0 %v127
    %v129 = vpop.xlane.xlu0 %128
    %v130 = vsel %vm84, %v83, 0.0
    %131 = vadd.xlane.f32.xlu0 %v130
    %v132 = vpop.xlane.xlu0 %131
    %v133 = vld [vmem:[%s0] sm:$0x3]
    %v134 = vld [vmem:[%s2] sm:$0x3]
    %v135 = vmul.f32 %v133, 2.0
    %137 = vset.pattern.permute.xlu0 0
    %138 = vperm.xlu0 %137, %v134
    %v139 = vpop.permute.xlu0 %138
    %v157 = vlaneseq
    %v158 = vand.u32 %v157, 127
    %v159 = vlaneseq
    %v160 = vshrl.u32 %v159, 7
    %v161 = vsub.s32 %v158, %v160
    %v162 = vrot.slane %v87, %v161
    %v163 = vadd.s32 %v158, 4294967288
    %v164 = vlaneseq
    %v165 = vshrl.u32 %v164, 7
    %v166 = vsub.s32 %v163, %v165
    %v167 = vrot.slane %v90, %v166
    %vm168 = vcmask 130112
    %v169 = vsel %vm168, %v167, %v162
    %v170 = vadd.s32 %v158, 4294967280
    %v171 = vlaneseq
    %v172 = vshrl.u32 %v171, 7
    %v173 = vsub.s32 %v170, %v172
    %v174 = vrot.slane %v93, %v173
    %vm175 = vcmask 195712
    %v176 = vsel %vm175, %v174, %v169
    %v177 = vadd.s32 %v158, 4294967272
    %v178 = vlaneseq
    %v179 = vshrl.u32 %v178, 7
    %v180 = vsub.s32 %v177, %v179
    %v181 = vrot.slane %v96, %v180
    %vm182 = vcmask 261312
    %v183 = vsel %vm182, %v181, %v176
    %v184 = vadd.s32 %v158, 4294967264
    %v185 = vlaneseq
    %v186 = vshrl.u32 %v185, 7
    %v187 = vsub.s32 %v184, %v186
    %v188 = vrot.slane %v99, %v187
    %vm189 = vcmask 326912
    %v190 = vsel %vm189, %v188, %v183
    %v191 = vadd.s32 %v158, 4294967256
    %v192 = vlaneseq
    %v193 = vshrl.u32 %v192, 7
    %v194 = vsub.s32 %v191, %v193
    %v195 = vrot.slane %v102, %v194
    %vm196 = vcmask 392512
    %v197 = vsel %vm196, %v195, %v190
    %v198 = vadd.s32 %v158, 4294967248
    %v199 = vlaneseq
    %v200 = vshrl.u32 %v199, 7
    %v201 = vsub.s32 %v198, %v200
    %v202 = vrot.slane %v105, %v201
    %vm203 = vcmask 458112
    %v204 = vsel %vm203, %v202, %v197
    %v205 = vadd.s32 %v158, 4294967240
    %v206 = vlaneseq
    %v207 = vshrl.u32 %v206, 7
    %v208 = vsub.s32 %v205, %v207
    %v209 = vrot.slane %v108, %v208
    %vm210 = vcmask 523712
    %v211 = vsel %vm210, %v209, %v204
    %v212 = vlaneseq
    %v213 = vshrl.u32 %v212, 7
    %v214 = vsub.s32 %v158, %v213
    %v215 = vrot.slane %v111, %v214
    %v216 = vlaneseq
    %v217 = vshrl.u32 %v216, 7
    %v218 = vsub.s32 %v163, %v217
    %v219 = vrot.slane %v114, %v218
    %v220 = vsel %vm168, %v219, %v215
    %v221 = vlaneseq
    %v222 = vshrl.u32 %v221, 7
    %v223 = vsub.s32 %v170, %v222
    %v224 = vrot.slane %v117, %v223
    %v225 = vsel %vm175, %v224, %v220
    %v226 = vlaneseq
    %v227 = vshrl.u32 %v226, 7
    %v228 = vsub.s32 %v177, %v227
    %v229 = vrot.slane %v120, %v228
    %v230 = vsel %vm182, %v229, %v225
    %v231 = vlaneseq
    %v232 = vshrl.u32 %v231, 7
    %v233 = vsub.s32 %v184, %v232
    %v234 = vrot.slane %v123, %v233
    %v235 = vsel %vm189, %v234, %v230
    %v236 = vlaneseq
    %v237 = vshrl.u32 %v236, 7
    %v238 = vsub.s32 %v191, %v237
    %v239 = vrot.slane %v126, %v238
    %v240 = vsel %vm196, %v239, %v235
    %v241 = vlaneseq
    %v242 = vshrl.u32 %v241, 7
    %v243 = vsub.s32 %v198, %v242
    %v244 = vrot.slane %v129, %v243
    %v245 = vsel %vm203, %v244, %v240
    %v246 = vlaneseq
    %v247 = vshrl.u32 %v246, 7
    %v248 = vsub.s32 %v205, %v247
    %v249 = vrot.slane %v132, %v248
    %v250 = vsel %vm210, %v249, %v245
    %vm251 = vcmask 1041409
    %v252 = vsel %vm251, %v250, %v211
    %v254 = vadd.f32 %v139, %v252
    %v255 = vmul.f32 %v135, %v254
    %v256 = vmul.f32 %v255, -0.5
    %v257 = vmin.f32 %v256, 0.0
    %v258 = vmul.f32 %v257, 1.442695
    %v259 = vpow.pop %v258
    %v260 = vadd.f32 %v259, 1.0
    %v261 = vlog2.pop %v260
    %v262 = vmul.f32 %v261, 0.6931472
    %v263 = vmul.f32 -0.5, %v259
    %v264 = vadd.f32 %v263, 1.0
    %v265 = vmul.f32 %v264, %v259
    %v266 = vand.u32 2147483647, %v259
    %vm267 = vcmp.lt.f32.partialorder %v266, 0.0004427343
    %v268 = vsel %vm267, %v265, %v262
    %vm269 = vcmask 517120
    %v270 = vsel %vm269, %v268, 0.0
    %271 = vadd.xlane.f32.xlu0 %v270
    %v272 = vpop.xlane.xlu0 %271
    %vm273 = vcmask 1024
    %v274 = vsel %vm273, %v272, 0.0
    %275 = vadd.xlane.f32.xlu0 %v274
    %v276 = vpop.xlane.xlu0 %275
    %v277 = vrot.slane %v276, 4
    %v278 = vadd.f32 %v276, %v277
    %v279 = vrot.slane %v278, 2
    %v280 = vadd.f32 %v278, %v279
    %v281 = vrot.slane %v280, 1
    %v282 = vadd.f32 %v280, %v281
    %s283 = vtos %v282
    %v284 = vstv %s283
    %vm285 = vcmask 0
    %286 = vst.msk [vmem:[#allocation2] sm:$0x1] %vm285, %v284
    // Predicated region
    $region18: #{tpu_custom_call.1} parent=1 // pred_check
      _
    $region19: #{tpu_custom_call.1} parent=1 // pred_check_branch
      %288 = sbr.rel (0) target = $region21
    $region20: #{tpu_custom_call.1} parent=1 // pred_region
      %s290 = ssub.s32 16, 16
      %291 = vsyncadd [#allocation3], %s290
      %s293 = sshll.u32 [#allocation2], 4
      %s294 = int_to_ptr.vmem [resolvable:$true] %s293
      %296 = dma.vmem_to_hbm [thread:$0]  %s294, 16, %s4, [#allocation3]
    $region21: #{tpu_custom_call.1} parent=1 // pred_fallthru
      _
    // Predicated region
    $region22: #{tpu_custom_call.1} parent=1 // pred_check
      _
    $region23: #{tpu_custom_call.1} parent=1 // pred_check_branch
      %298 = sbr.rel (0) target = $region25
    $region24: #{tpu_custom_call.1} parent=1 // pred_region
      %299 = dma.done [#allocation3], 16
    $region25: #{tpu_custom_call.1} parent=1 // pred_fallthru
      _
    %300 = vsyncpa [#allocation3], 1

</llo_original>
